<compile_context>
chip_gen: v6e
topology: v6e:2x2x1
jax: 0.10.0
libtpu: 0.0.40
codegen_flags: <defaults>
</compile_context>

<pallas_src>
from itertools import combinations

import numpy as np
import jax
import jax.numpy as jnp
from jax.experimental import pallas as pl
from jax.experimental.pallas import tpu as pltpu


BETWEEN_BLOCK_ROWS = 512   # (512, 128) f32 = 256 KiB per stream buffer
WITHIN_BLOCK_ROWS = 256    # (r, 256, 128) f32 <= 512 KiB per stream buffer


# ------------------------------ small helpers ------------------------------

def _pad_flat_to_lanes(flat, lanes=128):
    """Zero-pad the last axis to a multiple of `lanes` (returns (padded, pad))."""
    pad = (-flat.shape[-1]) % lanes
    if pad:
        pad_shape = flat.shape[:-1] + (pad,)
        flat = jnp.concatenate(
            [flat, jnp.zeros(pad_shape, flat.dtype)], axis=-1)
    return flat, pad


# ----------------------------- Pallas kernels ------------------------------

def _add_kernel(c_ref, d_ref, o_ref):
    o_ref[...] = c_ref[...] + d_ref[...]


def tiled_add_inplace(comp2d, delta2d):
    """components[m][1] += delta[m], tiled over lane-dense (rows, 128) slabs."""
    rows, lanes = comp2d.shape                      # lanes == 128
    br = min(BETWEEN_BLOCK_ROWS, rows)              # 512 (8-aligned) or full dim
    grid = (pl.cdiv(rows, br),)
    nbytes = int(comp2d.size) * 4 * 3
    return pl.pallas_call(
        _add_kernel,
        out_shape=jax.ShapeDtypeStruct(comp2d.shape, jnp.float32),
        grid=grid,
        in_specs=[pl.BlockSpec((br, lanes), lambda i: (i, 0)),
                  pl.BlockSpec((br, lanes), lambda i: (i, 0))],
        out_specs=pl.BlockSpec((br, lanes), lambda i: (i, 0)),
        input_output_aliases={0: 0},
        compiler_params=pltpu.CompilerParams(
            dimension_semantics=("parallel",)),
        cost_estimate=pl.CostEstimate(flops=int(comp2d.size),
                                      transcendentals=0,
                                      bytes_accessed=nbytes),
    )(comp2d, delta2d)


def _make_within_s_kernel(r):
    """new_s[p] = sum_b g[p,b] * s[b] on lane/sublane-dense (br, 128) slabs."""
    def kernel(g_ref, s_ref, o_ref):
        # g_ref: SMEM flat (r*r,) holding inv(G)*det row-major.
        for p in range(r):
            acc = g_ref[p * r] * s_ref[0]
            for b in range(1, r):
                acc = acc + g_ref[p * r + b] * s_ref[b]
            o_ref[p] = acc
    return kernel


def tiled_within_s(g_flat, s3d, r):
    _, rows, lanes = s3d.shape                      # lanes == 128
    br = min(WITHIN_BLOCK_ROWS, rows)
    grid = (pl.cdiv(rows, br),)
    nbytes = int(s3d.size) * 4 * 2 + int(g_flat.size) * 4
    return pl.pallas_call(
        _make_within_s_kernel(r),
        out_shape=jax.ShapeDtypeStruct(s3d.shape, jnp.float32),
        grid=grid,
        in_specs=[pl.BlockSpec(memory_space=pltpu.MemorySpace.SMEM),
                  pl.BlockSpec((r, br, lanes), lambda i: (0, i, 0))],
        out_specs=pl.BlockSpec((r, br, lanes), lambda i: (0, i, 0)),
        input_output_aliases={1: 0},
        compiler_params=pltpu.CompilerParams(
            dimension_semantics=("parallel",)),
        cost_estimate=pl.CostEstimate(flops=2 * r * int(s3d.size),
                                      transcendentals=0,
                                      bytes_accessed=nbytes),
    )(g_flat, s3d)


def _make_within_v_kernel(n, ranks):
    """Tiny fused transform of all vector factors: new_v = (G/det) @ v."""
    def kernel(*refs):
        g_refs = refs[:n]
        v_refs = refs[n:2 * n]
        o_refs = refs[2 * n:]
        for m in range(n):
            r = ranks[m]
            for p in range(r):
                acc = g_refs[m][p * r] * v_refs[m][0:1, :]
                for b in range(1, r):
                    acc = acc + g_refs[m][p * r + b] * v_refs[m][b:b + 1, :]
                o_refs[m][p:p + 1, :] = acc
    return kernel


def fused_within_v(g_flats, vs, ranks):
    n = len(vs)
    in_specs = ([pl.BlockSpec(memory_space=pltpu.MemorySpace.SMEM)] * n +
                [pl.BlockSpec(tuple(v.shape), lambda i: (0, 0)) for v in vs])
    out_specs = tuple(pl.BlockSpec(tuple(v.shape), lambda i: (0, 0))
                      for v in vs)
    out_shape = tuple(jax.ShapeDtypeStruct(v.shape, jnp.float32) for v in vs)
    aliases = {n + m: m for m in range(n)}
    return pl.pallas_call(
        _make_within_v_kernel(n, tuple(ranks)),
        out_shape=out_shape,
        grid=(1,),
        in_specs=in_specs,
        out_specs=out_specs,
        input_output_aliases=aliases,
        compiler_params=pltpu.CompilerParams(
            dimension_semantics=("arbitrary",)),
    )(*g_flats, *vs)


# -------------------------- synthetic sliceTCA model -----------------------

class SliceTCAModel:
    """Minimal sliceTCA-like container: 3-way tensor, one slice type per mode."""

    def __init__(self, dims, subranks, key):
        self.dims = list(dims)
        self.subranks = list(subranks)
        n = len(dims)
        self.partitions = [[[i], [d for d in range(n) if d != i]]
                           for i in range(n)]
        self.vectors = []
        keys = jax.random.split(key, 2 * n)
        for i in range(n):
            v = jax.random.normal(keys[2 * i], (subranks[i], dims[i]),
                                  jnp.float32)
            s_shape = tuple([subranks[i]] +
                            [dims[d] for d in self.partitions[i][1]])
            s = jax.random.normal(keys[2 * i + 1], s_shape, jnp.float32)
            self.vectors.append([v, s])

    def get_components(self):
        return [[jnp.array(v), jnp.array(s)] for (v, s) in self.vectors]


# ------------------------------ uniqueness ---------------------------------

class UniquenessPallas:
    def __init__(self, model, positive=False, criterion=2, key=None):
        self.criterion = criterion
        self.model = model
        self.number_components = len(model.subranks)
        key = jax.random.PRNGKey(1) if key is None else key
        n = self.number_components
        keys = jax.random.split(key, n + n * n)

        # free_gl (used by within(), i.e. criterion != 2)
        self.free_gl = []
        for idx, r in enumerate(model.subranks):
            if positive:
                self.free_gl.append(jnp.eye(r, dtype=jnp.float32))
            else:
                self.free_gl.append(
                    jax.random.normal(keys[idx], (r, r), jnp.float32))

        # Hoisted det / inverse / scaling of the tiny GL matrices (frozen).
        # TODO(synk): jnp.linalg.det / inv have no clean Pallas equivalent;
        # they run once here as plain-JAX glue on 2x2..4x4 matrices.
        self._within_modes = [i for i in range(n) if model.subranks[i] != 0]
        self._g_v_flat = {}
        self._g_s_flat = {}
        for m in self._within_modes:
            G = self.free_gl[m]
            det = jnp.linalg.det(G)
            self._g_v_flat[m] = jnp.asarray((G / det).reshape(-1), jnp.float32)
            self._g_s_flat[m] = jnp.asarray(
                (jnp.linalg.inv(G) * det).reshape(-1), jnp.float32)

        # free vectors for every pair of component types
        # (zeroed when positive=True -- matches torch.randn(...) * (1 - int(positive)))
        self.remaining_index = {}
        self.free_vectors = {}
        kidx = n
        for (i, j) in combinations(range(n), 2):
            if model.subranks[i] != 0 and model.subranks[j] != 0:
                temp = set(model.partitions[i][1]).intersection(
                    set(model.partitions[j][1]))
                rem = list(temp)
                self.remaining_index[(i, j)] = rem
                shape = tuple([model.subranks[i], model.subranks[j]] +
                              [model.dims[d] for d in rem])
                fv = jax.random.normal(keys[kidx], shape, jnp.float32)
                fv = fv * (1.0 - float(positive))
                self.free_vectors[(i, j)] = fv
            kidx += 1

        # ---- one-time precompute of between() deltas --------------------
        # between() uses the frozen model.vectors (PyTorch keeps a
        # requires_grad=False deepcopy), so the pair deltas are
        # component-independent and are hoisted out of the per-call path,
        # already permuted into each slice factor's native axis order and
        # padded to a lane-dense (rows, 128) slab.
        deltas = {}
        for (c0, c1) in combinations(range(n), 2):
            if model.subranks[c0] == 0 or model.subranks[c1] == 0:
                continue
            a_index = model.partitions[c0][0][0]
            b_index = model.partitions[c1][0][0]
            rem = self.remaining_index[(c0, c1)]
            F = self.free_vectors[(c0, c1)]          # (Ri, Rj, *rem_dims)
            v_i = model.vectors[c0][0]               # (Ri, Da)
            v_j = model.vectors[c1][0]               # (Rj, Db)
            # A -> subtracted from components[c1][1]; B -> added to [c0][1]
            A_t = jnp.einsum('ia,ij...->ja...', v_i, F)   # (Rj, Da, *rem)
            B_t = jnp.einsum('jb,ij...->ib...', v_j, F)   # (Ri, Db, *rem)
            B_indexes = [a_index] + rem
            A_indexes = [b_index] + rem
            perm_A = [B_indexes.index(d) for d in model.partitions[c1][1]]
            perm_B = [A_indexes.index(d) for d in model.partitions[c0][1]]
            A_nat = jnp.transpose(A_t, [0] + [1 + p for p in perm_A])
            B_nat = jnp.transpose(B_t, [0] + [1 + p for p in perm_B])
            deltas[c0] = deltas.get(c0, 0.0) + B_nat
            deltas[c1] = deltas.get(c1, 0.0) - A_nat

        self._between_modes = sorted(deltas.keys())
        self._between_delta2d = {}
        self._between_pad = {}
        for m in self._between_modes:
            d = jnp.asarray(deltas[m], jnp.float32).reshape(-1)
            d, pad = _pad_flat_to_lanes(d)
            self._between_delta2d[m] = d.reshape(-1, 128)
            self._between_pad[m] = pad

    # --------------------------- between (criterion == 2) ------------------
    def between(self, components):
        components = [list(c) for c in components]
        for m in self._between_modes:
            s = jnp.asarray(components[m][1], jnp.float32)
            shape = s.shape
            total = int(np.prod(shape))
            flat = s.reshape(-1)
            pad = self._between_pad[m]
            if pad:
                # TODO(synk): one extra copy when prod(shape) % 128 != 0;
                # the frozen delta side was padded for free at init.
                flat = jnp.concatenate(
                    [flat, jnp.zeros((pad,), jnp.float32)])
            out = tiled_add_inplace(flat.reshape(-1, 128),
                                    self._between_delta2d[m])
            out = out.reshape(-1)
            if pad:
                out = out[:total]
            components[m][1] = out.reshape(shape)
        return components

    # --------------------------- within (criterion == 3) -------------------
    def within(self, components):
        components = [list(c) for c in components]
        modes = self._within_modes
        if not modes:
            return components
        # tiny vector factors: one small fused Pallas call
        vs = [jnp.asarray(components[m][0], jnp.float32) for m in modes]
        ranks = [int(v.shape[0]) for v in vs]
        v_outs = fused_within_v([self._g_v_flat[m] for m in modes], vs, ranks)
        for k, m in enumerate(modes):
            components[m][0] = v_outs[k]
        # large slice factors: tiled, lane/sublane-dense, in-place per mode
        for m in modes:
            s = jnp.asarray(components[m][1], jnp.float32)
            shape = s.shape
            r = int(shape[0])
            per_rank = int(np.prod(shape[1:]))
            flat = s.reshape(r, per_rank)
            flat, pad = _pad_flat_to_lanes(flat)
            s3d = flat.reshape(r, -1, 128)
            out = tiled_within_s(self._g_s_flat[m], s3d, r)
            out = out.reshape(r, -1)
            if pad:
                out = out[:, :per_rank]
            components[m][1] = out.reshape(shape)
        return components

    def __call__(self, components):
        if self.criterion == 2:
            return self.between(components)
        if self.criterion == 3:
            return self.within(components)
        return self.within(self.between(components))


# ------------------------- pure-JAX references ------------------------------

def _batch_outer_ref(a, b):
    na, nb = a.ndim - 1, b.ndim - 1
    a_exp = a.reshape(a.shape + (1,) * nb)
    b_exp = b.reshape((b.shape[0],) + (1,) * na + b.shape[1:])
    return a_exp * b_exp


def reference_between(uniq, components):
    model = uniq.model
    comps = [[jnp.array(c[0]), jnp.array(c[1])] for c in components]
    for (c0, c1) in combinations(range(uniq.number_components), 2):
        if model.subranks[c0] == 0 or model.subranks[c1] == 0:
            continue
        a_index = model.partitions[c0][0][0]
        b_index = model.partitions[c1][0][0]
        rem = uniq.remaining_index[(c0, c1)]
        A_indexes = [b_index] + rem
        B_indexes = [a_index] + rem
        perm_B = [A_indexes.index(d) for d in model.partitions[c0][1]]
        perm_A = [B_indexes.index(d) for d in model.partitions[c1][1]]
        fv = uniq.free_vectors[(c0, c1)]
        A = _batch_outer_ref(model.vectors[c0][0], fv).sum(axis=0)
        B = _batch_outer_ref(model.vectors[c1][0],
                             jnp.swapaxes(fv, 0, 1)).sum(axis=0)
        A = jnp.swapaxes(A, 0, 1)
        B = jnp.swapaxes(B, 0, 1)
        A = jnp.transpose(A, [0] + [1 + p for p in perm_A])
        B = jnp.transpose(B, [0] + [1 + p for p in perm_B])
        comps[c0][1] = comps[c0][1] + B
        comps[c1][1] = comps[c1][1] - A
    return comps


def reference_within(uniq, components):
    comps = [[jnp.array(c[0]), jnp.array(c[1])] for c in components]
    for i in range(uniq.number_components):
        if uniq.model.subranks[i] == 0:
            continue
        G = uniq.free_gl[i]
        det = jnp.linalg.det(G)
        comps[i][0] = (G / det) @ comps[i][0]
        comps[i][1] = jnp.einsum('pq,q...->p...',
                                 jnp.linalg.inv(G) * det, comps[i][1])
    return comps


# ----------------------------------- main -----------------------------------

if __name__ == "__main__":
    key = jax.random.PRNGKey(0)
    k_model, k_uniq = jax.random.split(key)

    dims = [8, 12, 16]          # (e.g. neurons, time, trials)
    subranks = [2, 3, 4]

    model = SliceTCAModel(dims, subranks, k_model)

    # ---- criterion == 2 : between() (default forward path) -----------------
    uniq = UniquenessPallas(model, positive=False, criterion=2, key=k_uniq)
    out = uniq(model.get_components())
    out = jax.tree_util.tree_map(jax.block_until_ready, out)
    ref = reference_between(uniq, model.get_components())
    for o_c, r_c in zip(out, ref):
        for o, r in zip(o_c, r_c):
            np.testing.assert_allclose(np.asarray(o), np.asarray(r),
                                       rtol=1e-4, atol=1e-4)

    # ---- criterion == 3 : within() ------------------------------------------
    uniq_w = UniquenessPallas(model, positive=False, criterion=3, key=k_uniq)
    out_w = uniq_w(model.get_components())
    out_w = jax.tree_util.tree_map(jax.block_until_ready, out_w)
    ref_w = reference_within(uniq_w, model.get_components())
    for o_c, r_c in zip(out_w, ref_w):
        for o, r in zip(o_c, r_c):
            np.testing.assert_allclose(np.asarray(o), np.asarray(r),
                                       rtol=1e-4, atol=1e-4)

    print("KERNEL_OK")
</pallas_src>

<mosaic_0001>
module attributes {stable_mosaic.version = 11 : i64} {
  func.func @_add_kernel(%arg0: i32, %arg1: memref<3x128xf32, #tpu.memory_space<vmem>>, %arg2: memref<3x128xf32, #tpu.memory_space<vmem>>, %arg3: memref<3x128xf32, #tpu.memory_space<vmem>>) attributes {dimension_semantics = [#tpu.dimension_semantics<parallel>], iteration_bounds = array<i64: 1>, scalar_prefetch = 0 : i64, scratch_operands = 0 : i64, tpu.core_type = #tpu.core_type<tc>, window_params = [{transform_indices = @transform_0, window_bounds = array<i64: 3, 128>}, {transform_indices = @transform_1, window_bounds = array<i64: 3, 128>}, {transform_indices = @transform_2, window_bounds = array<i64: 3, 128>}]} {
    %c0 = arith.constant 0 : index
    %c0_0 = arith.constant 0 : index
    %0 = vector.load %arg1[%c0, %c0_0] : memref<3x128xf32, #tpu.memory_space<vmem>>, vector<3x128xf32>
    %c0_1 = arith.constant 0 : index
    %c0_2 = arith.constant 0 : index
    %1 = vector.load %arg2[%c0_1, %c0_2] : memref<3x128xf32, #tpu.memory_space<vmem>>, vector<3x128xf32>
    %2 = arith.addf %0, %1 : vector<3x128xf32>
    %c0_3 = arith.constant 0 : index
    %c0_4 = arith.constant 0 : index
    %3 = vector.load %arg3[%c0_3, %c0_4] : memref<3x128xf32, #tpu.memory_space<vmem>>, vector<3x128xf32>
    tpu.vector_store %arg3[%c0_3, %c0_4], %2 {strides = array<i32>} : memref<3x128xf32, #tpu.memory_space<vmem>>, vector<3x128xf32>,
    return
  }
  func.func @transform_0(%arg0: i32) -> (i32, i32) {
    %c0_i32 = arith.constant 0 : i32
    %c0_i32_0 = arith.constant 0 : i32
    return %arg0, %c0_i32 : i32, i32
  }
  func.func @transform_1(%arg0: i32) -> (i32, i32) {
    %c0_i32 = arith.constant 0 : i32
    %c0_i32_0 = arith.constant 0 : i32
    return %arg0, %c0_i32 : i32, i32
  }
  func.func @transform_2(%arg0: i32) -> (i32, i32) {
    %c0_i32 = arith.constant 0 : i32
    %c0_i32_0 = arith.constant 0 : i32
    return %arg0, %c0_i32 : i32, i32
  }
}

</mosaic_0001>

<llo_original>
// kernel: tpu_custom_call.1
$region0: #{tpu_custom_call.1}
  #allocation0 [shape = 'u32[]', space=smem, size = 0x4, offset = 0x4, fixed_abs, tag = 'smem constant byte address 0x4 - core index']
  #allocation1 [shape = 'u32[144,128]{1,0:T(1,128)}', space=vmem, size = 0x12000, scoped, tag = 'internal scratch']
  %s0 = inlined_call_operand.hbm [shape: f32[3,128], index: 0, kind: input, shape index: {}, may-alias: {0,2}]
  %s1 = inlined_call_operand.vmem [shape: f32[3,128], index: 1, kind: input, shape index: {}]
  %s2 = inlined_call_operand.hbm [shape: f32[3,128], index: 2, kind: output, shape index: {}, may-alias: {0,2}]
  %s3 = sld [smem:[#allocation0]]
  $region22: #{tpu_custom_call.1} parent=0
    _
  %s5 = ssub.s32 1, %s3
  %s6 = scalar_select 0, %s5, %s3
  $region1: #{tpu_custom_call.1} parent=0
    #allocation2 [shape = 'u8[2048]{0}', space=vmem, size = 0x800, scoped, tag = 'input window, operand 0, single buffered']
    #allocation3 [shape = 's32[1]{0}', space=sflag, size = 0x4, scoped, tag = 'scoped memory for tpu_custom_call.1']
    #allocation4 [shape = 's32[1]{0}', space=sflag, size = 0x4, scoped, tag = 'scoped memory for tpu_custom_call.1']
    #allocation5 [shape = 'u8[2048]{0}', space=vmem, size = 0x800, scoped, tag = 'output window, operand 0, single buffered']
    %7 = vsyncpa [#allocation3], 0
    %8 = vsyncpa [#allocation4], 0
    // Predicated region
    $region2: #{tpu_custom_call.1} parent=1 // pred_check
      _
    $region3: #{tpu_custom_call.1} parent=1 // pred_check_branch
      %10 = sbr.rel (0) target = $region5
    $region4: #{tpu_custom_call.1} parent=1 // pred_region
      %s12 = ssub.s32 64, 64
      %13 = vsyncadd [#allocation3], %s12
      %s15 = sshll.u32 [#allocation2], 4
      %s16 = int_to_ptr.vmem [resolvable:$true] %s15
      %18 = dma.hbm_to_vmem [thread:$0]  %s0, 64, %s16, [#allocation3]
    $region5: #{tpu_custom_call.1} parent=1 // pred_fallthru
      _
    // Predicated region
    $region6: #{tpu_custom_call.1} parent=1 // pred_check
      _
    $region7: #{tpu_custom_call.1} parent=1 // pred_check_branch
      %20 = sbr.rel (0) target = $region9
    $region8: #{tpu_custom_call.1} parent=1 // pred_region
      _
    $region9: #{tpu_custom_call.1} parent=1 // pred_fallthru
      _
    // Predicated region
    $region10: #{tpu_custom_call.1} parent=1 // pred_check
      _
    $region11: #{tpu_custom_call.1} parent=1 // pred_check_branch
      %22 = sbr.rel (0) target = $region13
    $region12: #{tpu_custom_call.1} parent=1 // pred_region
      %23 = dma.done [#allocation3], 64
    $region13: #{tpu_custom_call.1} parent=1 // pred_fallthru
      _
    %v24 = vld [vmem:[#allocation2] sm:$0x7]
    %v25 = vld [vmem:[%s1] sm:$0x7]
    %v26 = vadd.f32 %v24, %v25
    %27 = vst [vmem:[#allocation5] sm:$0x7] %v26
    // Predicated region
    $region14: #{tpu_custom_call.1} parent=1 // pred_check
      _
    $region15: #{tpu_custom_call.1} parent=1 // pred_check_branch
      %29 = sbr.rel (0) target = $region17
    $region16: #{tpu_custom_call.1} parent=1 // pred_region
      %s31 = ssub.s32 64, 64
      %32 = vsyncadd [#allocation4], %s31
      %s34 = sshll.u32 [#allocation5], 4
      %s35 = int_to_ptr.vmem [resolvable:$true] %s34
      %37 = dma.vmem_to_hbm [thread:$0]  %s35, 64, %s2, [#allocation4]
    $region17: #{tpu_custom_call.1} parent=1 // pred_fallthru
      _
    // Predicated region
    $region18: #{tpu_custom_call.1} parent=1 // pred_check
      _
    $region19: #{tpu_custom_call.1} parent=1 // pred_check_branch
      %39 = sbr.rel (0) target = $region21
    $region20: #{tpu_custom_call.1} parent=1 // pred_region
      %40 = dma.done [#allocation4], 64
    $region21: #{tpu_custom_call.1} parent=1 // pred_fallthru
      _
    %41 = vsyncpa [#allocation3], 1
    %42 = vsyncpa [#allocation4], 1

</llo_original>
